<compile_context>
chip_gen: v7x
topology: tpu7x:2x2x1
jax: 0.10.0
libtpu: 0.0.40
codegen_flags: <defaults>
</compile_context>

<pallas_src>
import math

import jax
import jax.numpy as jnp
from jax import lax
from jax.experimental import pallas as pl
from jax.experimental.pallas import tpu as pltpu

V_THRESHOLD = 1.0
LANE = 128


def _round_up(x, m):
    return ((x + m - 1) // m) * m


def _spike(z_f32, thr_f32):
    # TODO(synk): `spiking_neuron` is an unspecified constructor argument in the
    # PyTorch module; implemented here as a stateless Heaviside spike at
    # threshold 1.0 (IF node without persistent membrane state).  The bias is
    # folded into the threshold (spike(z + b >= 1) == spike(z >= 1 - b)); the
    # 0/1 result is cast to bf16 exactly for the next MXU matmul.
    return (z_f32 >= thr_f32).astype(jnp.bfloat16)


def alexnet_kernel(x_ref, w1, t1, w2, t2, w3, t3, w4, t4, w5, b5,
                   out_ref, acc_ref):
    t = pl.program_id(1)

    @pl.when(t == 0)
    def _():
        acc_ref[...] = jnp.zeros_like(acc_ref)

    x = x_ref[...]  # (tile, in_dim) bf16
    # features: Linear -> spike, x3  (bf16 MXU matmuls, f32 accumulation)
    h = _spike(jnp.dot(x, w1[...], preferred_element_type=jnp.float32), t1[...])
    h = _spike(jnp.dot(h, w2[...], preferred_element_type=jnp.float32), t2[...])
    h = _spike(jnp.dot(h, w3[...], preferred_element_type=jnp.float32), t3[...])
    # classifier: Linear -> spike -> Linear (output padded to 128 lanes)
    h = _spike(jnp.dot(h, w4[...], preferred_element_type=jnp.float32), t4[...])
    acc_ref[...] += jnp.dot(h, w5[...], preferred_element_type=jnp.float32) + b5[...]

    @pl.when(t == pl.num_programs(1) - 1)
    def _():
        out_ref[...] = acc_ref[...]


def init_params(key, in_dim):
    """Deterministic PyTorch-Linear-style init: W is (out, in), b is (out,)."""
    dims = [(in_dim, 64), (64, 128), (128, 256), (256, 256), (256, 10)]
    params = []
    for fan_in, fan_out in dims:
        key, kw, kb = jax.random.split(key, 3)
        bound = 1.0 / math.sqrt(fan_in)
        w = jax.random.uniform(kw, (fan_out, fan_in), jnp.float32, -bound, bound)
        b = jax.random.uniform(kb, (fan_out,), jnp.float32, -bound, bound)
        params.append((w, b))
    return params


def _prep_weights(params):
    """Transpose to (fan_in, fan_out), zero-pad narrow dims to lane width (128),
    cast weights to bf16, fold hidden-layer biases into f32 spike thresholds.
    All padding is exact: padded layer-1 columns see threshold 1.0 and a dot
    result of 0 -> spike 0, the matching padded w2 rows are zero; padded
    classifier columns stay 0 and are sliced away in the wrapper."""
    ws = [jnp.asarray(w).T for w, _ in params]   # (fan_in, fan_out)
    bs = [jnp.asarray(b) for _, b in params]

    # layer 1 fan_out: 64 -> 128 ; layer 2 fan_in to match
    pad1 = _round_up(ws[0].shape[1], LANE) - ws[0].shape[1]
    ws[0] = jnp.pad(ws[0], ((0, 0), (0, pad1)))
    bs[0] = jnp.pad(bs[0], ((0, pad1),))
    ws[1] = jnp.pad(ws[1], ((0, pad1), (0, 0)))

    # classifier head fan_out: 10 -> 128 (lane-dense output store)
    pad5 = _round_up(ws[4].shape[1], LANE) - ws[4].shape[1]
    ws[4] = jnp.pad(ws[4], ((0, 0), (0, pad5)))
    bs[4] = jnp.pad(bs[4], ((0, pad5),))

    ws = [w.astype(jnp.bfloat16) for w in ws]
    # Fold hidden-layer biases into the spike threshold: z + b >= 1  <=>  z >= 1 - b.
    thrs = [(V_THRESHOLD - b).reshape(1, -1).astype(jnp.float32) for b in bs[:4]]
    b5 = bs[4].reshape(1, -1).astype(jnp.float32)
    return ws, thrs, b5


def _build_lhs(x, in_dim):
    """Stack the per-time-step clamped windows exactly as PyTorch does:
    x[:, start:start+in_dim, :].reshape(-1, in_dim), start = min(t, T-in_dim).
    Returns (T, rows, in_dim) with rows = B*D."""
    B, T, D = x.shape
    rows = B * D

    def step(start):
        sl = lax.dynamic_slice(x, (0, start, 0), (B, in_dim, D))
        return sl.reshape(rows, in_dim)  # same row-major reshape as torch

    starts = jnp.minimum(jnp.arange(T), T - in_dim)
    x_steps = jax.vmap(step)(starts)          # (T, rows, in_dim)
    return x_steps, rows
    # TODO(synk): for large B*T*D, replace this materialization with
    # scalar-prefetched window offsets (num_scalar_prefetch=1 + index_map on
    # the time axis) so the overlapping windows are not replicated ~in_dim x
    # in HBM.  Low priority at the sizes exercised here.


def _pick_row_tile(rows, row_tile):
    tile = min(row_tile, _round_up(rows, 8))
    if rows >= 16:
        # Keep >= 2 steps on the parallel row axis so v7x's 2 TensorCores both
        # get work (the time axis is "arbitrary" and cannot be sharded).
        tile = min(tile, _round_up((rows + 1) // 2, 8))
    return max(tile, 8)


def alexnet_forward(x, params, in_dim, *, row_tile=4096):
    assert x.ndim == 3, "dimension of x is not correct!"
    B, T, D = x.shape
    assert T >= in_dim, "time axis must be at least in_dim for valid slicing"

    lhs, rows = _build_lhs(x, in_dim)          # (T, rows, in_dim)
    lhs = lhs.astype(jnp.bfloat16)

    tile = _pick_row_tile(rows, row_tile)
    rows_pad = _round_up(rows, tile)
    if rows_pad != rows:
        lhs = jnp.pad(lhs, ((0, 0), (0, rows_pad - rows), (0, 0)))

    ws, thrs, b5 = _prep_weights(params)
    out_cols = ws[-1].shape[1]                 # 128 (lane-dense)

    in_specs = [pl.BlockSpec((None, tile, in_dim), lambda i, t: (t, i, 0))]
    operands = [lhs]
    for w, v in zip(ws, thrs + [b5]):
        in_specs.append(pl.BlockSpec(w.shape, lambda i, t: (0, 0)))
        in_specs.append(pl.BlockSpec(v.shape, lambda i, t: (0, 0)))
        operands += [w, v]

    out_full = pl.pallas_call(
        alexnet_kernel,
        out_shape=jax.ShapeDtypeStruct((rows_pad, out_cols), jnp.float32),
        grid_spec=pltpu.PrefetchScalarGridSpec(
            num_scalar_prefetch=0,
            grid=(rows_pad // tile, T),        # reduction (time) axis last
            in_specs=in_specs,
            out_specs=pl.BlockSpec((tile, out_cols), lambda i, t: (i, 0)),
            scratch_shapes=[pltpu.VMEM((tile, out_cols), jnp.float32)],
        ),
        compiler_params=pltpu.CompilerParams(
            dimension_semantics=("parallel", "arbitrary"),
            vmem_limit_bytes=48 * 1024 * 1024,
        ),
    )(*operands)

    # Drop row padding + lane padding.  The time sum already happened in-kernel.
    return out_full[:rows, :10]


def _reference(x, params, in_dim):
    """Pure-JAX reference using the same bf16 weights / f32 accumulation."""
    lhs, rows = _build_lhs(x, in_dim)          # (T, rows, in_dim)
    T = lhs.shape[0]
    h = lhs.reshape(T * rows, in_dim).astype(jnp.bfloat16)
    ws, thrs, b5 = _prep_weights(params)
    for w, thr in zip(ws[:-1], thrs):
        h = _spike(jnp.dot(h, w, preferred_element_type=jnp.float32), thr)
    out = jnp.dot(h, ws[-1], preferred_element_type=jnp.float32) + b5
    return out[:, :10].reshape(T, rows, 10).sum(axis=0)


if __name__ == "__main__":
    key = jax.random.PRNGKey(0)
    kx, kp = jax.random.split(key)

    # Small shapes consistent with the forward: (batch, time, feature) with
    # time >= in_dim so both branches of the window clamp are exercised.
    in_dim = 16
    B, T, D = 2, 24, 4

    x = jax.random.normal(kx, (B, T, D), dtype=jnp.float32)
    params = init_params(kp, in_dim)

    out = alexnet_forward(x, params, in_dim)
    out = jax.block_until_ready(out)

    assert out.shape == (B * D, 10)
    assert out.dtype == jnp.float32

    ref = _reference(x, params, in_dim)
    assert jnp.allclose(out, ref, atol=1e-2, rtol=1e-2), (
        "kernel output mismatch vs reference"
    )

    print("KERNEL_OK")
</pallas_src>

<mosaic_0001>
module attributes {stable_mosaic.version = 11 : i64} {
  func.func @alexnet_kernel(%arg0: i32, %arg1: i32, %arg2: memref<1x8x16xbf16, #tpu.memory_space<vmem>>, %arg3: memref<16x128xbf16, #tpu.memory_space<vmem>>, %arg4: memref<1x128xf32, #tpu.memory_space<vmem>>, %arg5: memref<128x128xbf16, #tpu.memory_space<vmem>>, %arg6: memref<1x128xf32, #tpu.memory_space<vmem>>, %arg7: memref<128x256xbf16, #tpu.memory_space<vmem>>, %arg8: memref<1x256xf32, #tpu.memory_space<vmem>>, %arg9: memref<256x256xbf16, #tpu.memory_space<vmem>>, %arg10: memref<1x256xf32, #tpu.memory_space<vmem>>, %arg11: memref<256x128xbf16, #tpu.memory_space<vmem>>, %arg12: memref<1x128xf32, #tpu.memory_space<vmem>>, %arg13: memref<8x128xf32, #tpu.memory_space<vmem>>, %arg14: memref<8x128xf32, #tpu.memory_space<vmem>>) attributes {dimension_semantics = [#tpu.dimension_semantics<parallel>, #tpu.dimension_semantics<arbitrary>], iteration_bounds = array<i64: 1, 24>, scalar_prefetch = 0 : i64, scratch_operands = 1 : i64, tpu.core_type = #tpu.core_type<tc>, window_params = [{transform_indices = @transform_0, window_bounds = array<i64: 1, 8, 16>}, {pipeline_mode = #tpu.pipeline_mode<synchronous>, transform_indices = @transform_1, window_bounds = array<i64: 16, 128>}, {pipeline_mode = #tpu.pipeline_mode<synchronous>, transform_indices = @transform_2, window_bounds = array<i64: 1, 128>}, {pipeline_mode = #tpu.pipeline_mode<synchronous>, transform_indices = @transform_3, window_bounds = array<i64: 128, 128>}, {pipeline_mode = #tpu.pipeline_mode<synchronous>, transform_indices = @transform_4, window_bounds = array<i64: 1, 128>}, {pipeline_mode = #tpu.pipeline_mode<synchronous>, transform_indices = @transform_5, window_bounds = array<i64: 128, 256>}, {pipeline_mode = #tpu.pipeline_mode<synchronous>, transform_indices = @transform_6, window_bounds = array<i64: 1, 256>}, {pipeline_mode = #tpu.pipeline_mode<synchronous>, transform_indices = @transform_7, window_bounds = array<i64: 256, 256>}, {pipeline_mode = #tpu.pipeline_mode<synchronous>, transform_indices = @transform_8, window_bounds = array<i64: 1, 256>}, {pipeline_mode = #tpu.pipeline_mode<synchronous>, transform_indices = @transform_9, window_bounds = array<i64: 256, 128>}, {pipeline_mode = #tpu.pipeline_mode<synchronous>, transform_indices = @transform_10, window_bounds = array<i64: 1, 128>}, {transform_indices = @transform_11, window_bounds = array<i64: 8, 128>}]} {
    %c0_i32 = arith.constant 0 : i32
    %0 = arith.cmpi eq, %arg1, %c0_i32 : i32
    %1 = arith.extui %0 : i1 to i32
    %c0_i32_0 = arith.constant 0 : i32
    %2 = arith.cmpi ne, %1, %c0_i32_0 : i32
    scf.if %2 {
      %cst_32 = arith.constant 0.000000e+00 : f32
      %48 = vector.broadcast %cst_32 : f32 to vector<8x128xf32>
      %c0_33 = arith.constant 0 : index
      %c0_34 = arith.constant 0 : index
      %49 = vector.load %arg14[%c0_33, %c0_34] : memref<8x128xf32, #tpu.memory_space<vmem>>, vector<8x128xf32>
      tpu.vector_store %arg14[%c0_33, %c0_34], %48 {strides = array<i32>} : memref<8x128xf32, #tpu.memory_space<vmem>>, vector<8x128xf32>,
    } else {
    }
    %c0 = arith.constant 0 : index
    %c0_1 = arith.constant 0 : index
    %c0_2 = arith.constant 0 : index
    %3 = vector.load %arg2[%c0, %c0_1, %c0_2] : memref<1x8x16xbf16, #tpu.memory_space<vmem>>, vector<1x8x16xbf16>
    %4 = vector.shape_cast %3 : vector<1x8x16xbf16> to vector<8x16xbf16>
    %c0_3 = arith.constant 0 : index
    %c0_4 = arith.constant 0 : index
    %5 = vector.load %arg3[%c0_3, %c0_4] : memref<16x128xbf16, #tpu.memory_space<vmem>>, vector<16x128xbf16>
    %cst = arith.constant dense<0.000000e+00> : vector<8x128xf32>
    %6 = tpu.matmul %4, %5, %cst {dimension_numbers = #tpu.dot_dimension_numbers<[1], [0], [0], [1], [0, 0, 1, 1], [], []>} : vector<8x16xbf16>, vector<16x128xbf16>, vector<8x128xf32> -> vector<8x128xf32>
    %c0_5 = arith.constant 0 : index
    %c0_6 = arith.constant 0 : index
    %7 = vector.load %arg4[%c0_5, %c0_6] : memref<1x128xf32, #tpu.memory_space<vmem>>, vector<1x128xf32>
    %8 = vector.broadcast %7 : vector<1x128xf32> to vector<8x128xf32>
    %9 = arith.cmpf oge, %6, %8 : vector<8x128xf32>
    %10 = arith.extui %9 : vector<8x128xi1> to vector<8x128xi32>
    %11 = arith.sitofp %10 : vector<8x128xi32> to vector<8x128xf32>
    %12 = arith.truncf %11 : vector<8x128xf32> to vector<8x128xbf16>
    %c0_7 = arith.constant 0 : index
    %c0_8 = arith.constant 0 : index
    %13 = vector.load %arg5[%c0_7, %c0_8] : memref<128x128xbf16, #tpu.memory_space<vmem>>, vector<128x128xbf16>
    %cst_9 = arith.constant dense<0.000000e+00> : vector<8x128xf32>
    %14 = tpu.matmul %12, %13, %cst_9 {dimension_numbers = #tpu.dot_dimension_numbers<[1], [0], [0], [1], [0, 0, 1, 1], [], []>} : vector<8x128xbf16>, vector<128x128xbf16>, vector<8x128xf32> -> vector<8x128xf32>
    %c0_10 = arith.constant 0 : index
    %c0_11 = arith.constant 0 : index
    %15 = vector.load %arg6[%c0_10, %c0_11] : memref<1x128xf32, #tpu.memory_space<vmem>>, vector<1x128xf32>
    %16 = vector.broadcast %15 : vector<1x128xf32> to vector<8x128xf32>
    %17 = arith.cmpf oge, %14, %16 : vector<8x128xf32>
    %18 = arith.extui %17 : vector<8x128xi1> to vector<8x128xi32>
    %19 = arith.sitofp %18 : vector<8x128xi32> to vector<8x128xf32>
    %20 = arith.truncf %19 : vector<8x128xf32> to vector<8x128xbf16>
    %c0_12 = arith.constant 0 : index
    %c0_13 = arith.constant 0 : index
    %21 = vector.load %arg7[%c0_12, %c0_13] : memref<128x256xbf16, #tpu.memory_space<vmem>>, vector<128x256xbf16>
    %cst_14 = arith.constant dense<0.000000e+00> : vector<8x256xf32>
    %22 = tpu.matmul %20, %21, %cst_14 {dimension_numbers = #tpu.dot_dimension_numbers<[1], [0], [0], [1], [0, 0, 1, 1], [], []>} : vector<8x128xbf16>, vector<128x256xbf16>, vector<8x256xf32> -> vector<8x256xf32>
    %c0_15 = arith.constant 0 : index
    %c0_16 = arith.constant 0 : index
    %23 = vector.load %arg8[%c0_15, %c0_16] : memref<1x256xf32, #tpu.memory_space<vmem>>, vector<1x256xf32>
    %24 = vector.broadcast %23 : vector<1x256xf32> to vector<8x256xf32>
    %25 = arith.cmpf oge, %22, %24 : vector<8x256xf32>
    %26 = arith.extui %25 : vector<8x256xi1> to vector<8x256xi32>
    %27 = arith.sitofp %26 : vector<8x256xi32> to vector<8x256xf32>
    %28 = arith.truncf %27 : vector<8x256xf32> to vector<8x256xbf16>
    %c0_17 = arith.constant 0 : index
    %c0_18 = arith.constant 0 : index
    %29 = vector.load %arg9[%c0_17, %c0_18] : memref<256x256xbf16, #tpu.memory_space<vmem>>, vector<256x256xbf16>
    %cst_19 = arith.constant dense<0.000000e+00> : vector<8x256xf32>
    %30 = tpu.matmul %28, %29, %cst_19 {dimension_numbers = #tpu.dot_dimension_numbers<[1], [0], [0], [1], [0, 0, 1, 1], [], []>} : vector<8x256xbf16>, vector<256x256xbf16>, vector<8x256xf32> -> vector<8x256xf32>
    %c0_20 = arith.constant 0 : index
    %c0_21 = arith.constant 0 : index
    %31 = vector.load %arg10[%c0_20, %c0_21] : memref<1x256xf32, #tpu.memory_space<vmem>>, vector<1x256xf32>
    %32 = vector.broadcast %31 : vector<1x256xf32> to vector<8x256xf32>
    %33 = arith.cmpf oge, %30, %32 : vector<8x256xf32>
    %34 = arith.extui %33 : vector<8x256xi1> to vector<8x256xi32>
    %35 = arith.sitofp %34 : vector<8x256xi32> to vector<8x256xf32>
    %36 = arith.truncf %35 : vector<8x256xf32> to vector<8x256xbf16>
    %c0_22 = arith.constant 0 : index
    %c0_23 = arith.constant 0 : index
    %37 = vector.load %arg14[%c0_22, %c0_23] : memref<8x128xf32, #tpu.memory_space<vmem>>, vector<8x128xf32>
    %c0_24 = arith.constant 0 : index
    %c0_25 = arith.constant 0 : index
    %38 = vector.load %arg11[%c0_24, %c0_25] : memref<256x128xbf16, #tpu.memory_space<vmem>>, vector<256x128xbf16>
    %cst_26 = arith.constant dense<0.000000e+00> : vector<8x128xf32>
    %39 = tpu.matmul %36, %38, %cst_26 {dimension_numbers = #tpu.dot_dimension_numbers<[1], [0], [0], [1], [0, 0, 1, 1], [], []>} : vector<8x256xbf16>, vector<256x128xbf16>, vector<8x128xf32> -> vector<8x128xf32>
    %c0_27 = arith.constant 0 : index
    %c0_28 = arith.constant 0 : index
    %40 = vector.load %arg12[%c0_27, %c0_28] : memref<1x128xf32, #tpu.memory_space<vmem>>, vector<1x128xf32>
    %41 = vector.broadcast %40 : vector<1x128xf32> to vector<8x128xf32>
    %42 = arith.addf %39, %41 : vector<8x128xf32>
    %43 = arith.addf %37, %42 : vector<8x128xf32>
    %c0_29 = arith.constant 0 : index
    %c0_30 = arith.constant 0 : index
    %44 = vector.load %arg14[%c0_29, %c0_30] : memref<8x128xf32, #tpu.memory_space<vmem>>, vector<8x128xf32>
    tpu.vector_store %arg14[%c0_29, %c0_30], %43 {strides = array<i32>} : memref<8x128xf32, #tpu.memory_space<vmem>>, vector<8x128xf32>,
    %c23_i32 = arith.constant 23 : i32
    %45 = arith.cmpi eq, %arg1, %c23_i32 : i32
    %46 = arith.extui %45 : i1 to i32
    %c0_i32_31 = arith.constant 0 : i32
    %47 = arith.cmpi ne, %46, %c0_i32_31 : i32
    scf.if %47 {
      %c0_32 = arith.constant 0 : index
      %c0_33 = arith.constant 0 : index
      %48 = vector.load %arg14[%c0_32, %c0_33] : memref<8x128xf32, #tpu.memory_space<vmem>>, vector<8x128xf32>
      %c0_34 = arith.constant 0 : index
      %c0_35 = arith.constant 0 : index
      %49 = vector.load %arg13[%c0_34, %c0_35] : memref<8x128xf32, #tpu.memory_space<vmem>>, vector<8x128xf32>
      tpu.vector_store %arg13[%c0_34, %c0_35], %48 {strides = array<i32>} : memref<8x128xf32, #tpu.memory_space<vmem>>, vector<8x128xf32>,
    } else {
    }
    return
  }
  func.func @transform_0(%arg0: i32, %arg1: i32) -> (i32, i32, i32) {
    %c0_i32 = arith.constant 0 : i32
    %c0_i32_0 = arith.constant 0 : i32
    return %arg1, %arg0, %c0_i32 : i32, i32, i32
  }
  func.func @transform_1(%arg0: i32, %arg1: i32) -> (i32, i32) {
    %c0_i32 = arith.constant 0 : i32
    %c0_i32_0 = arith.constant 0 : i32
    %c0_i32_1 = arith.constant 0 : i32
    return %c0_i32, %c0_i32_0 : i32, i32
  }
  func.func @transform_2(%arg0: i32, %arg1: i32) -> (i32, i32) {
    %c0_i32 = arith.constant 0 : i32
    %c0_i32_0 = arith.constant 0 : i32
    %c0_i32_1 = arith.constant 0 : i32
    return %c0_i32, %c0_i32_0 : i32, i32
  }
  func.func @transform_3(%arg0: i32, %arg1: i32) -> (i32, i32) {
    %c0_i32 = arith.constant 0 : i32
    %c0_i32_0 = arith.constant 0 : i32
    %c0_i32_1 = arith.constant 0 : i32
    return %c0_i32, %c0_i32_0 : i32, i32
  }
  func.func @transform_4(%arg0: i32, %arg1: i32) -> (i32, i32) {
    %c0_i32 = arith.constant 0 : i32
    %c0_i32_0 = arith.constant 0 : i32
    %c0_i32_1 = arith.constant 0 : i32
    return %c0_i32, %c0_i32_0 : i32, i32
  }
  func.func @transform_5(%arg0: i32, %arg1: i32) -> (i32, i32) {
    %c0_i32 = arith.constant 0 : i32
    %c0_i32_0 = arith.constant 0 : i32
    %c0_i32_1 = arith.constant 0 : i32
    return %c0_i32, %c0_i32_0 : i32, i32
  }
  func.func @transform_6(%arg0: i32, %arg1: i32) -> (i32, i32) {
    %c0_i32 = arith.constant 0 : i32
    %c0_i32_0 = arith.constant 0 : i32
    %c0_i32_1 = arith.constant 0 : i32
    return %c0_i32, %c0_i32_0 : i32, i32
  }
  func.func @transform_7(%arg0: i32, %arg1: i32) -> (i32, i32) {
    %c0_i32 = arith.constant 0 : i32
    %c0_i32_0 = arith.constant 0 : i32
    %c0_i32_1 = arith.constant 0 : i32
    return %c0_i32, %c0_i32_0 : i32, i32
  }
  func.func @transform_8(%arg0: i32, %arg1: i32) -> (i32, i32) {
    %c0_i32 = arith.constant 0 : i32
    %c0_i32_0 = arith.constant 0 : i32
    %c0_i32_1 = arith.constant 0 : i32
    return %c0_i32, %c0_i32_0 : i32, i32
  }
  func.func @transform_9(%arg0: i32, %arg1: i32) -> (i32, i32) {
    %c0_i32 = arith.constant 0 : i32
    %c0_i32_0 = arith.constant 0 : i32
    %c0_i32_1 = arith.constant 0 : i32
    return %c0_i32, %c0_i32_0 : i32, i32
  }
  func.func @transform_10(%arg0: i32, %arg1: i32) -> (i32, i32) {
    %c0_i32 = arith.constant 0 : i32
    %c0_i32_0 = arith.constant 0 : i32
    %c0_i32_1 = arith.constant 0 : i32
    return %c0_i32, %c0_i32_0 : i32, i32
  }
  func.func @transform_11(%arg0: i32, %arg1: i32) -> (i32, i32) {
    %c0_i32 = arith.constant 0 : i32
    %c0_i32_0 = arith.constant 0 : i32
    return %arg0, %c0_i32 : i32, i32
  }
}

</mosaic_0001>

<llo_original>
// kernel: tpu_custom_call.1
$region0: #{tpu_custom_call.1}
  #allocation0 [shape = 'u32[]', space=smem, size = 0x4, offset = 0x4, fixed_abs, tag = 'smem constant byte address 0x4 - core index']
  #allocation1 [shape = 'u32[144,128]{1,0:T(1,128)}', space=vmem, size = 0x12000, scoped, tag = 'internal scratch']
  #allocation2 [shape = 'f32[8,128]{1,0:T(8,128)}', space=vmem, size = 0x1000, scoped, tag = 'scratch operand']
  %s0 = inlined_call_operand.vmem [shape: bf16[24,8,16], index: 0, kind: input, shape index: {}]
  %s1 = inlined_call_operand.vmem [shape: bf16[16,128], index: 1, kind: input, shape index: {}]
  %s2 = inlined_call_operand.vmem [shape: f32[1,128], index: 2, kind: input, shape index: {}]
  %s3 = inlined_call_operand.hbm [shape: bf16[128,128], index: 3, kind: input, shape index: {}]
  %s4 = inlined_call_operand.vmem [shape: f32[1,128], index: 4, kind: input, shape index: {}]
  %s5 = inlined_call_operand.vmem [shape: bf16[128,256], index: 5, kind: input, shape index: {}]
  %s6 = inlined_call_operand.vmem [shape: f32[1,256], index: 6, kind: input, shape index: {}]
  %s7 = inlined_call_operand.hbm [shape: bf16[256,256], index: 7, kind: input, shape index: {}]
  %s8 = inlined_call_operand.vmem [shape: f32[1,256], index: 8, kind: input, shape index: {}]
  %s9 = inlined_call_operand.hbm [shape: bf16[256,128], index: 9, kind: input, shape index: {}]
  %s10 = inlined_call_operand.vmem [shape: f32[1,128], index: 10, kind: input, shape index: {}]
  %s11 = inlined_call_operand.hbm [shape: f32[8,128], index: 11, kind: output, shape index: {}]
  %s12 = sld [smem:[#allocation0]]
  $region97: #{tpu_custom_call.1} parent=0
    _
  %s14 = ssub.s32 1, %s12
  %s15 = scalar_select 0, %s14, %s12
  $region1: #{tpu_custom_call.1} parent=0
    #allocation3 [shape = 'u8[32768]{0}', space=vmem, size = 0x8000, scoped, tag = 'input window, operand 3, single buffered']
    #allocation4 [shape = 's32[2]{0}', space=sflag, size = 0x8, scoped, tag = 'scoped memory for tpu_custom_call.1']
    #allocation5 [shape = 's32[2]{0}', space=sflag, size = 0x8, scoped, tag = 'scoped memory for tpu_custom_call.1']
    #allocation6 [shape = 'u8[131072]{0}', space=vmem, size = 0x20000, scoped, tag = 'input window, operand 7, single buffered']
    #allocation7 [shape = 's32[1]{0}', space=sflag, size = 0x4, scoped, tag = 'scoped memory for tpu_custom_call.1']
    #allocation8 [shape = 'u8[65536]{0}', space=vmem, size = 0x10000, scoped, tag = 'input window, operand 9, single buffered']
    #allocation9 [shape = 'u8[4096]{0}', space=vmem, size = 0x1000, scoped, tag = 'output window, operand 0, single buffered']
    %16 = vsyncpa [#allocation4], 0
    %17 = vsyncpa [#allocation7], 0
    %18 = vsyncpa [#allocation5], 0
    loop: start=0, step=1, limit=26
    $region2: #{tpu_custom_call.1} parent=1 // loop_pre_header
      _
    $region3: #{tpu_custom_call.1} parent=1 // loop_header
      %s20 = sphi 0, %s24
      %p21 = scmp.ge.s32.totalorder %s20, 26
      %s27 = sphi 0, %s39
      %s28 = sphi 0, %s35
      %s29 = sphi 0, %s27
      %s30 = sphi 0, %s28
      %s31 = sphi 0, %s29
      %s32 = sphi 0, %s30
      %s44 = sphi 0, %s46
      %s47 = sphi 0, %s44
      %s48 = sphi 0, %s47
      %s64 = sphi 0, %s48
      %s68 = sphi 0, %s68
      %s70 = sphi 0, %s68
      %s71 = sphi 0, %s70
      %s85 = sphi 0, %s71
      %s89 = sphi 0, %s89
      %s91 = sphi 0, %s89
      %s92 = sphi 0, %s91
      %s106 = sphi 0, %s92
      %s110 = sphi 0, %s110
      %s112 = sphi 0, %s110
      %s113 = sphi 0, %s112
      %s127 = sphi 0, %s113
      %s131 = sphi 0, %s131
      %s133 = sphi 0, %s131
      %s134 = sphi 0, %s133
      %s148 = sphi 0, %s134
      %s152 = sphi 0, %s152
      %s154 = sphi 0, %s152
      %s155 = sphi 0, %s154
      %s169 = sphi 0, %s155
      %s173 = sphi 0, %s173
      %s175 = sphi 0, %s173
      %s176 = sphi 0, %s175
      %s190 = sphi 0, %s176
      %s194 = sphi 0, %s194
      %s196 = sphi 0, %s194
      %s197 = sphi 0, %s196
      %s211 = sphi 0, %s197
      %s215 = sphi 0, %s215
      %s217 = sphi 0, %s215
      %s218 = sphi 0, %s217
      %s232 = sphi 0, %s218
      %s236 = sphi 0, %s236
      %s238 = sphi 0, %s236
      %s239 = sphi 0, %s238
      %s253 = sphi 0, %s239
      %s257 = sphi 0, %s257
      %s259 = sphi 0, %s257
      %s260 = sphi 0, %s259
      %s274 = sphi 0, %s260
      %s280 = sphi 0, %s282
      %s283 = sphi 0, %s280
      %s284 = sphi 0, %s283
      %s300 = sphi 0, %s284
    $region4: #{tpu_custom_call.1} parent=1 // loop_header_branch
      %23 = sbr.rel (%p21) target = $region8
    $region5: #{tpu_custom_call.1} parent=1 // loop_body
      %s25 = ssub.s32 %s20, 1
      %s26 = ssub.s32 %s20, 2
      %s33 = sadd.s32 1, %s28
      %p34 = scmp.ge.s32.totalorder %s33, 24
      %s35 = scalar_select %p34, 0, %s33
      %s36 = sadd.s32 1, %s27
      %s37 = scalar_select %p34, %s36, %s27
      %p38 = scmp.ge.s32.totalorder %s37, 1
      %s39 = scalar_select %p38, 0, %s37
      %s40 = ssub.s32 %s28, %s35
      %s41 = ssub.s32 %s27, %s39
      %s42 = sor.u32 %s40, %s41
      %p43 = scmp.eq.s32.totalorder %s42, 0
      %s45 = sadd.s32 %s44, 1
      %s46 = scalar_select %p43, %s44, %s45
      %p49 = pneg %p43
      %p50 = scmp.eq.s32.totalorder %s20, 23
      %p51 = por %p49, %p50
      %p52 = scmp.ne.s32.totalorder %s44, %s47
      %p53 = scmp.eq.s32.totalorder %s20, 0
      %p54 = por %p52, %p53
      %p55 = scmp.ne.s32.totalorder %s44, %s47
      %p56 = scmp.eq.s32.totalorder %s25, 23
      %p57 = por %p55, %p56
      %p58 = scmp.ne.s32.totalorder %s47, %s48
      %p59 = scmp.eq.s32.totalorder %s25, 0
      %p60 = por %p58, %p59
      %p61 = scmp.ne.s32.totalorder %s47, %s48
      %p62 = scmp.eq.s32.totalorder %s26, 23
      %p63 = por %p61, %p62
      %p65 = scmp.ne.s32.totalorder %s48, %s64
      %p66 = scmp.eq.s32.totalorder %s26, 0
      %p67 = por %p65, %p66
      %s69 = sadd.s32 %s68, 1
      %p72 = scmp.eq.s32.totalorder %s20, 23
      %p73 = scmp.ne.s32.totalorder %s68, %s70
      %p74 = scmp.eq.s32.totalorder %s20, 0
      %p75 = por %p73, %p74
      %p76 = scmp.ne.s32.totalorder %s68, %s70
      %p77 = scmp.eq.s32.totalorder %s25, 23
      %p78 = por %p76, %p77
      %p79 = scmp.ne.s32.totalorder %s70, %s71
      %p80 = scmp.eq.s32.totalorder %s25, 0
      %p81 = por %p79, %p80
      %p82 = scmp.ne.s32.totalorder %s70, %s71
      %p83 = scmp.eq.s32.totalorder %s26, 23
      %p84 = por %p82, %p83
      %p86 = scmp.ne.s32.totalorder %s71, %s85
      %p87 = scmp.eq.s32.totalorder %s26, 0
      %p88 = por %p86, %p87
      %s90 = sadd.s32 %s89, 1
      %p93 = scmp.eq.s32.totalorder %s20, 23
      %p94 = scmp.ne.s32.totalorder %s89, %s91
      %p95 = scmp.eq.s32.totalorder %s20, 0
      %p96 = por %p94, %p95
      %p97 = scmp.ne.s32.totalorder %s89, %s91
      %p98 = scmp.eq.s32.totalorder %s25, 23
      %p99 = por %p97, %p98
      %p100 = scmp.ne.s32.totalorder %s91, %s92
      %p101 = scmp.eq.s32.totalorder %s25, 0
      %p102 = por %p100, %p101
      %p103 = scmp.ne.s32.totalorder %s91, %s92
      %p104 = scmp.eq.s32.totalorder %s26, 23
      %p105 = por %p103, %p104
      %p107 = scmp.ne.s32.totalorder %s92, %s106
      %p108 = scmp.eq.s32.totalorder %s26, 0
      %p109 = por %p107, %p108
      %s111 = sadd.s32 %s110, 1
      %p114 = scmp.eq.s32.totalorder %s20, 23
      %p115 = scmp.ne.s32.totalorder %s110, %s112
      %p116 = scmp.eq.s32.totalorder %s20, 0
      %p117 = por %p115, %p116
      %p118 = scmp.ne.s32.totalorder %s110, %s112
      %p119 = scmp.eq.s32.totalorder %s25, 23
      %p120 = por %p118, %p119
      %p121 = scmp.ne.s32.totalorder %s112, %s113
      %p122 = scmp.eq.s32.totalorder %s25, 0
      %p123 = por %p121, %p122
      %p124 = scmp.ne.s32.totalorder %s112, %s113
      %p125 = scmp.eq.s32.totalorder %s26, 23
      %p126 = por %p124, %p125
      %p128 = scmp.ne.s32.totalorder %s113, %s127
      %p129 = scmp.eq.s32.totalorder %s26, 0
      %p130 = por %p128, %p129
      %s132 = sadd.s32 %s131, 1
      %p135 = scmp.eq.s32.totalorder %s20, 23
      %p136 = scmp.ne.s32.totalorder %s131, %s133
      %p137 = scmp.eq.s32.totalorder %s20, 0
      %p138 = por %p136, %p137
      %p139 = scmp.ne.s32.totalorder %s131, %s133
      %p140 = scmp.eq.s32.totalorder %s25, 23
      %p141 = por %p139, %p140
      %p142 = scmp.ne.s32.totalorder %s133, %s134
      %p143 = scmp.eq.s32.totalorder %s25, 0
      %p144 = por %p142, %p143
      %p145 = scmp.ne.s32.totalorder %s133, %s134
      %p146 = scmp.eq.s32.totalorder %s26, 23
      %p147 = por %p145, %p146
      %p149 = scmp.ne.s32.totalorder %s134, %s148
      %p150 = scmp.eq.s32.totalorder %s26, 0
      %p151 = por %p149, %p150
      %s153 = sadd.s32 %s152, 1
      %p156 = scmp.eq.s32.totalorder %s20, 23
      %p157 = scmp.ne.s32.totalorder %s152, %s154
      %p158 = scmp.eq.s32.totalorder %s20, 0
      %p159 = por %p157, %p158
      %p160 = scmp.ne.s32.totalorder %s152, %s154
      %p161 = scmp.eq.s32.totalorder %s25, 23
      %p162 = por %p160, %p161
      %p163 = scmp.ne.s32.totalorder %s154, %s155
      %p164 = scmp.eq.s32.totalorder %s25, 0
      %p165 = por %p163, %p164
      %p166 = scmp.ne.s32.totalorder %s154, %s155
      %p167 = scmp.eq.s32.totalorder %s26, 23
      %p168 = por %p166, %p167
      %p170 = scmp.ne.s32.totalorder %s155, %s169
      %p171 = scmp.eq.s32.totalorder %s26, 0
      %p172 = por %p170, %p171
      %s174 = sadd.s32 %s173, 1
      %p177 = scmp.eq.s32.totalorder %s20, 23
      %p178 = scmp.ne.s32.totalorder %s173, %s175
      %p179 = scmp.eq.s32.totalorder %s20, 0
      %p180 = por %p178, %p179
      %p181 = scmp.ne.s32.totalorder %s173, %s175
      %p182 = scmp.eq.s32.totalorder %s25, 23
      %p183 = por %p181, %p182
      %p184 = scmp.ne.s32.totalorder %s175, %s176
      %p185 = scmp.eq.s32.totalorder %s25, 0
      %p186 = por %p184, %p185
      %p187 = scmp.ne.s32.totalorder %s175, %s176
      %p188 = scmp.eq.s32.totalorder %s26, 23
      %p189 = por %p187, %p188
      %p191 = scmp.ne.s32.totalorder %s176, %s190
      %p192 = scmp.eq.s32.totalorder %s26, 0
      %p193 = por %p191, %p192
      %s195 = sadd.s32 %s194, 1
      %p198 = scmp.eq.s32.totalorder %s20, 23
      %p199 = scmp.ne.s32.totalorder %s194, %s196
      %p200 = scmp.eq.s32.totalorder %s20, 0
      %p201 = por %p199, %p200
      %p202 = scmp.ne.s32.totalorder %s194, %s196
      %p203 = scmp.eq.s32.totalorder %s25, 23
      %p204 = por %p202, %p203
      %p205 = scmp.ne.s32.totalorder %s196, %s197
      %p206 = scmp.eq.s32.totalorder %s25, 0
      %p207 = por %p205, %p206
      %p208 = scmp.ne.s32.totalorder %s196, %s197
      %p209 = scmp.eq.s32.totalorder %s26, 23
      %p210 = por %p208, %p209
      %p212 = scmp.ne.s32.totalorder %s197, %s211
      %p213 = scmp.eq.s32.totalorder %s26, 0
      %p214 = por %p212, %p213
      %s216 = sadd.s32 %s215, 1
      %p219 = scmp.eq.s32.totalorder %s20, 23
      %p220 = scmp.ne.s32.totalorder %s215, %s217
      %p221 = scmp.eq.s32.totalorder %s20, 0
      %p222 = por %p220, %p221
      %p223 = scmp.ne.s32.totalorder %s215, %s217
      %p224 = scmp.eq.s32.totalorder %s25, 23
      %p225 = por %p223, %p224
      %p226 = scmp.ne.s32.totalorder %s217, %s218
      %p227 = scmp.eq.s32.totalorder %s25, 0
      %p228 = por %p226, %p227
      %p229 = scmp.ne.s32.totalorder %s217, %s218
      %p230 = scmp.eq.s32.totalorder %s26, 23
      %p231 = por %p229, %p230
      %p233 = scmp.ne.s32.totalorder %s218, %s232
      %p234 = scmp.eq.s32.totalorder %s26, 0
      %p235 = por %p233, %p234
      %s237 = sadd.s32 %s236, 1
      %p240 = scmp.eq.s32.totalorder %s20, 23
      %p241 = scmp.ne.s32.totalorder %s236, %s238
      %p242 = scmp.eq.s32.totalorder %s20, 0
      %p243 = por %p241, %p242
      %p244 = scmp.ne.s32.totalorder %s236, %s238
      %p245 = scmp.eq.s32.totalorder %s25, 23
      %p246 = por %p244, %p245
      %p247 = scmp.ne.s32.totalorder %s238, %s239
      %p248 = scmp.eq.s32.totalorder %s25, 0
      %p249 = por %p247, %p248
      %p250 = scmp.ne.s32.totalorder %s238, %s239
      %p251 = scmp.eq.s32.totalorder %s26, 23
      %p252 = por %p250, %p251
      %p254 = scmp.ne.s32.totalorder %s239, %s253
      %p255 = scmp.eq.s32.totalorder %s26, 0
      %p256 = por %p254, %p255
      %s258 = sadd.s32 %s257, 1
      %p261 = scmp.eq.s32.totalorder %s20, 23
      %p262 = scmp.ne.s32.totalorder %s257, %s259
      %p263 = scmp.eq.s32.totalorder %s20, 0
      %p264 = por %p262, %p263
      %p265 = scmp.ne.s32.totalorder %s257, %s259
      %p266 = scmp.eq.s32.totalorder %s25, 23
      %p267 = por %p265, %p266
      %p268 = scmp.ne.s32.totalorder %s259, %s260
      %p269 = scmp.eq.s32.totalorder %s25, 0
      %p270 = por %p268, %p269
      %p271 = scmp.ne.s32.totalorder %s259, %s260
      %p272 = scmp.eq.s32.totalorder %s26, 23
      %p273 = por %p271, %p272
      %p275 = scmp.ne.s32.totalorder %s260, %s274
      %p276 = scmp.eq.s32.totalorder %s26, 0
      %p277 = por %p275, %p276
      %s278 = ssub.s32 %s27, %s39
      %p279 = scmp.eq.s32.totalorder %s278, 0
      %s281 = sadd.s32 %s280, 1
      %s282 = scalar_select %p279, %s280, %s281
      %p285 = pneg %p279
      %p286 = scmp.eq.s32.totalorder %s20, 23
      %p287 = por %p285, %p286
      %p288 = scmp.ne.s32.totalorder %s280, %s283
      %p289 = scmp.eq.s32.totalorder %s20, 0
      %p290 = por %p288, %p289
      %p291 = scmp.ne.s32.totalorder %s280, %s283
      %p292 = scmp.eq.s32.totalorder %s25, 23
      %p293 = por %p291, %p292
      %p294 = scmp.ne.s32.totalorder %s283, %s284
      %p295 = scmp.eq.s32.totalorder %s25, 0
      %p296 = por %p294, %p295
      %p297 = scmp.ne.s32.totalorder %s283, %s284
      %p298 = scmp.eq.s32.totalorder %s26, 23
      %p299 = por %p297, %p298
      %p301 = scmp.ne.s32.totalorder %s284, %s300
      %p302 = scmp.eq.s32.totalorder %s26, 0
      %p303 = por %p301, %p302
      %p304 = scmp.le.s32.totalorder 1, %s20
      %p305 = scmp.lt.s32.totalorder %s20, 25
      %p306 = pnand %p304, %p305
      %p307 = pneg %p306
      // Predicated region
      $region9: #{tpu_custom_call.1} parent=5 // pred_check
        _
      $region10: #{tpu_custom_call.1} parent=5 // pred_check_branch
        %309 = sbr.rel (%p306) target = $region12
      $region11: #{tpu_custom_call.1} parent=5 // pred_region
        %s310 = ssub.s32 %s20, 1
        // Predicated region
        $region13: #{tpu_custom_call.1} parent=11 // pred_check
          %p311 = pneg %p81
        $region14: #{tpu_custom_call.1} parent=11 // pred_check_branch
          %313 = sbr.rel (%p311) target = $region16
        $region15: #{tpu_custom_call.1} parent=11 // pred_region
          _
        $region16: #{tpu_custom_call.1} parent=11 // pred_fallthru
          _
        // Predicated region
        $region17: #{tpu_custom_call.1} parent=11 // pred_check
          %p314 = pneg %p102
        $region18: #{tpu_custom_call.1} parent=11 // pred_check_branch
          %316 = sbr.rel (%p314) target = $region20
        $region19: #{tpu_custom_call.1} parent=11 // pred_region
          _
        $region20: #{tpu_custom_call.1} parent=11 // pred_fallthru
          _
        // Predicated region
        $region21: #{tpu_custom_call.1} parent=11 // pred_check
          %p317 = pneg %p123
        $region22: #{tpu_custom_call.1} parent=11 // pred_check_branch
          %319 = sbr.rel (%p317) target = $region24
        $region23: #{tpu_custom_call.1} parent=11 // pred_region
          %s321 = ssub.s32 1024, 1024
          %322 = vsyncadd [#allocation4], %s321
          %s323 = sshll.u32 [#allocation3], 4
          %s324 = int_to_ptr.vmem [resolvable:$true] %s323
          %329 = dma.hbm_to_vmem [thread:$0]  %s3, 1024, %s324, [#allocation4], 64, 64, 4
        $region24: #{tpu_custom_call.1} parent=11 // pred_fallthru
          _
        // Predicated region
        $region25: #{tpu_custom_call.1} parent=11 // pred_check
          %p330 = pneg %p144
        $region26: #{tpu_custom_call.1} parent=11 // pred_check_branch
          %332 = sbr.rel (%p330) target = $region28
        $region27: #{tpu_custom_call.1} parent=11 // pred_region
          _
        $region28: #{tpu_custom_call.1} parent=11 // pred_fallthru
          _
        // Predicated region
        $region29: #{tpu_custom_call.1} parent=11 // pred_check
          %p333 = pneg %p165
        $region30: #{tpu_custom_call.1} parent=11 // pred_check_branch
          %335 = sbr.rel (%p333) target = $region32
        $region31: #{tpu_custom_call.1} parent=11 // pred_region
          _
        $region32: #{tpu_custom_call.1} parent=11 // pred_fallthru
          _
        // Predicated region
        $region33: #{tpu_custom_call.1} parent=11 // pred_check
          %p336 = pneg %p186
        $region34: #{tpu_custom_call.1} parent=11 // pred_check_branch
          %338 = sbr.rel (%p336) target = $region36
        $region35: #{tpu_custom_call.1} parent=11 // pred_region
          _
        $region36: #{tpu_custom_call.1} parent=11 // pred_fallthru
          _
        // Predicated region
        $region37: #{tpu_custom_call.1} parent=11 // pred_check
          %p339 = pneg %p207
        $region38: #{tpu_custom_call.1} parent=11 // pred_check_branch
          %341 = sbr.rel (%p339) target = $region40
        $region39: #{tpu_custom_call.1} parent=11 // pred_region
          %s343 = ssub.s32 4096, 4096
          %344 = vsyncadd [#allocation7], %s343
          %s345 = sshll.u32 [#allocation6], 4
          %s346 = int_to_ptr.vmem [resolvable:$true] %s345
          %351 = dma.hbm_to_vmem [thread:$0]  %s7, 4096, %s346, [#allocation7], 128, 128, 8
        $region40: #{tpu_custom_call.1} parent=11 // pred_fallthru
          _
        // Predicated region
        $region41: #{tpu_custom_call.1} parent=11 // pred_check
          %p352 = pneg %p228
        $region42: #{tpu_custom_call.1} parent=11 // pred_check_branch
          %354 = sbr.rel (%p352) target = $region44
        $region43: #{tpu_custom_call.1} parent=11 // pred_region
          _
        $region44: #{tpu_custom_call.1} parent=11 // pred_fallthru
          _
        // Predicated region
        $region45: #{tpu_custom_call.1} parent=11 // pred_check
          %p355 = pneg %p249
        $region46: #{tpu_custom_call.1} parent=11 // pred_check_branch
          %357 = sbr.rel (%p355) target = $region48
        $region47: #{tpu_custom_call.1} parent=11 // pred_region
          %s359 = ssub.s32 2048, 2048
          %360 = vsyncadd [#allocation7], %s359
          %s361 = sshll.u32 [#allocation8], 4
          %s362 = int_to_ptr.vmem [resolvable:$true] %s361
          %367 = dma.hbm_to_vmem [thread:$0]  %s9, 2048, %s362, [#allocation7], 64, 64, 4
        $region48: #{tpu_custom_call.1} parent=11 // pred_fallthru
          _
        // Predicated region
        $region49: #{tpu_custom_call.1} parent=11 // pred_check
          %p368 = pneg %p270
        $region50: #{tpu_custom_call.1} parent=11 // pred_check_branch
          %370 = sbr.rel (%p368) target = $region52
        $region51: #{tpu_custom_call.1} parent=11 // pred_region
          _
        $region52: #{tpu_custom_call.1} parent=11 // pred_fallthru
          _
      $region12: #{tpu_custom_call.1} parent=5 // pred_fallthru
        _
      %p371 = scmp.lt.s32.totalorder %s20, 24
      // Predicated region
      $region53: #{tpu_custom_call.1} parent=5 // pred_check
        %p372 = pneg %p371
      $region54: #{tpu_custom_call.1} parent=5 // pred_check_branch
        %374 = sbr.rel (%p372) target = $region56
      $region55: #{tpu_custom_call.1} parent=5 // pred_region
        // Predicated region
        $region57: #{tpu_custom_call.1} parent=55 // pred_check
          %p375 = pneg %p54
        $region58: #{tpu_custom_call.1} parent=55 // pred_check_branch
          %377 = sbr.rel (%p375) target = $region60
        $region59: #{tpu_custom_call.1} parent=55 // pred_region
          %p378 = scmp.lt.s32.totalorder %s28, 23
          %s379 = scalar_select %p378, %s28, 23
          %p380 = scmp.lt.s32.totalorder %s27, 0
          %s381 = scalar_select %p380, %s27, 0
          %s382 = sadd.s32 %s381, %s379
          %s383 = smul.addr %s382, 4
          %s384 = scalar_lea.vmem %s0, %s383
        $region60: #{tpu_custom_call.1} parent=55 // pred_fallthru
          _
      $region56: #{tpu_custom_call.1} parent=5 // pred_fallthru
        _
      %p385 = scmp.le.s32.totalorder 1, %s20
      %p386 = scmp.lt.s32.totalorder %s20, 25
      %p387 = pnand %p385, %p386
      %p388 = pneg %p387
      // Predicated region
      $region61: #{tpu_custom_call.1} parent=5 // pred_check
        _
      $region62: #{tpu_custom_call.1} parent=5 // pred_check_branch
        %390 = sbr.rel (%p387) target = $region64
      $region63: #{tpu_custom_call.1} parent=5 // pred_region
        %s391 = ssub.s32 %s20, 1
        // Predicated region
        $region65: #{tpu_custom_call.1} parent=63 // pred_check
          %p392 = pneg %p123
        $region66: #{tpu_custom_call.1} parent=63 // pred_check_branch
          %394 = sbr.rel (%p392) target = $region68
        $region67: #{tpu_custom_call.1} parent=63 // pred_region
          %395 = dma.done [#allocation4], 1024
        $region68: #{tpu_custom_call.1} parent=63 // pred_fallthru
          _
        // Predicated region
        $region69: #{tpu_custom_call.1} parent=63 // pred_check
          %p396 = pneg %p207
        $region70: #{tpu_custom_call.1} parent=63 // pred_check_branch
          %398 = sbr.rel (%p396) target = $region72
        $region71: #{tpu_custom_call.1} parent=63 // pred_region
          %399 = dma.done [#allocation7], 4096
        $region72: #{tpu_custom_call.1} parent=63 // pred_fallthru
          _
        // Predicated region
        $region73: #{tpu_custom_call.1} parent=63 // pred_check
          %p400 = pneg %p249
        $region74: #{tpu_custom_call.1} parent=63 // pred_check_branch
          %402 = sbr.rel (%p400) target = $region76
        $region75: #{tpu_custom_call.1} parent=63 // pred_region
          %403 = dma.done [#allocation7], 2048
        $region76: #{tpu_custom_call.1} parent=63 // pred_fallthru
          _
        %p404 = scmp.lt.s32.totalorder %s30, 23
        %s405 = scalar_select %p404, %s30, 23
        %p406 = scmp.lt.s32.totalorder %s29, 0
        %s407 = scalar_select %p406, %s29, 0
        %s408 = sadd.s32 %s407, %s405
        %s409 = smul.addr %s408, 4
        %s410 = scalar_lea.vmem %s0, %s409
        %p411 = pneg %p60
        %p412 = pneg %p57
        %p413 = pneg %p81
        %p414 = pneg %p78
        %p415 = pneg %p102
        %p416 = pneg %p99
        %p417 = pneg %p123
        %p418 = pneg %p120
        %p419 = pneg %p144
        %p420 = pneg %p141
        %p421 = pneg %p165
        %p422 = pneg %p162
        %p423 = pneg %p186
        %p424 = pneg %p183
        %p425 = pneg %p207
        %p426 = pneg %p204
        %p427 = pneg %p228
        %p428 = pneg %p225
        %p429 = pneg %p249
        %p430 = pneg %p246
        %p431 = pneg %p270
        %p432 = pneg %p267
        %p433 = pneg %p296
        %p434 = pneg %p293
        %p435 = scmp.lt.s32.totalorder %s30, 23
        %s436 = scalar_select %p435, %s30, 23
        %p437 = scmp.lt.s32.totalorder %s29, 0
        %s438 = scalar_select %p437, %s29, 0
        %s439 = sadd.s32 %s438, %s436
        %s440 = smul.addr %s439, 4
        %s441 = scalar_lea.vmem %s0, %s440
        %p443 = scmp.eq.s32.totalorder %s30, 0
        // Predicated region
        $region77: #{tpu_custom_call.1} parent=63 // pred_check
          %p444 = pneg %p443
        $region78: #{tpu_custom_call.1} parent=63 // pred_check_branch
          %446 = sbr.rel (%p444) target = $region80
        $region79: #{tpu_custom_call.1} parent=63 // pred_region
          %447 = vst [vmem:[#allocation2] sm:$0xff] 0.0
        $region80: #{tpu_custom_call.1} parent=63 // pred_fallthru
          _
        %v448 = vld [vmem:[%s441] sm:$0xf]
        %v449 = vld [vmem:[%s1] sm:$0xf]
        %v450 = vld [vmem:[%s1 + $0x4] sm:$0xf]
        %v453 = vunpack.c.l.b16 %v449
        %v454 = vunpack.c.l.b16 %v450
        %v455 = vpack.c.b16 %v454, %v453
        %vm457 = vcmask 130048
        %v459 = vsel %vm457, %v448, 0
        %461 = vmatprep.subr.bf16.mxu0 0
        %462 = vmatpush1.bf16.msra.mxu0 %v455
        %463 = vmatprep.subr.bf16.mxu0 0
        %464 = vmatpush1.bf16.msra.mxu0 0
        %465 = vmatprep.subr.bf16.mxu0 0
        %466 = vmatpush1.bf16.msra.mxu0 0
        %467 = vmatprep.subr.bf16.mxu0 0
        %468 = vmatpush1.bf16.msra.mxu0 0
        %469 = vmatprep.subr.bf16.mxu0 0
        %470 = vmatpush1.bf16.msra.mxu0 0
        %471 = vmatprep.subr.bf16.mxu0 0
        %472 = vmatpush1.bf16.msra.mxu0 0
        %473 = vmatprep.subr.bf16.mxu0 0
        %474 = vmatpush1.bf16.msra.mxu0 0
        %475 = vmatprep.subr.bf16.mxu0 0
        %476 = vmatpush1.bf16.msra.mxu0 0
        %477 = vmatprep.subr.bf16.mxu0 0
        %478 = vmatpush1.bf16.msra.mxu0 0
        %479 = vmatprep.subr.bf16.mxu0 0
        %480 = vmatpush1.bf16.msra.mxu0 0
        %481 = vmatprep.subr.bf16.mxu0 0
        %482 = vmatpush1.bf16.msra.mxu0 0
        %483 = vmatprep.subr.bf16.mxu0 0
        %484 = vmatpush1.bf16.msra.mxu0 0
        %485 = vmatprep.subr.bf16.mxu0 0
        %486 = vmatpush1.bf16.msra.mxu0 0
        %487 = vmatprep.subr.bf16.mxu0 0
        %488 = vmatpush1.bf16.msra.mxu0 0
        %489 = vmatprep.subr.bf16.mxu0 0
        %490 = vmatpush1.bf16.msra.mxu0 0
        %491 = vmatprep.subr.bf16.mxu0 0
        %492 = vmatpush1.bf16.msra.mxu0 0
        %493 = vmatprep.mubr.bf16.mxu0 0
        %494 = vmatmul.mubr.bf16.gmra.mrb[0].mxu0 %v459
        %v495 = vpop.f32.mrb[0].mxu0
        %v496 = vadd.f32 0.0, %v495
        %v497 = vpop.f32.mrb[0].mxu0
        %v498 = vpop.f32.mrb[0].mxu0
        %v499 = vpop.f32.mrb[0].mxu0
        %500 = vdwg.mxu0
        %v501 = vld [vmem:[%s2] sm:$0x1]
        %v503 = vlaneseq
        %v504 = vshrl.u32 %v503, 7
        %v505 = vsub.s32 0, %v504
        %v506 = vrot.slane %v501, %v505
        %vm508 = vcmp.ge.f32.partialorder %v496, %v506
        %v509 = vsel %vm508, 1, 0
        %v510 = vcvt.s32.f32 %v509
        %v511 = vpack.c.bf16 %v510, %v510
        %v512 = vld [vmem:[#allocation3] sm:$0xf]
        %v513 = vld [vmem:[#allocation3 + $0x4] sm:$0xf]
        %v514 = vld [vmem:[#allocation3 + $0x8] sm:$0xf]
        %v515 = vld [vmem:[#allocation3 + $0xc] sm:$0xf]
        %v516 = vld [vmem:[#allocation3 + $0x10] sm:$0xf]
        %v517 = vld [vmem:[#allocation3 + $0x14] sm:$0xf]
        %v518 = vld [vmem:[#allocation3 + $0x18] sm:$0xf]
        %v519 = vld [vmem:[#allocation3 + $0x1c] sm:$0xf]
        %v520 = vld [vmem:[#allocation3 + $0x20] sm:$0xf]
        %v521 = vld [vmem:[#allocation3 + $0x24] sm:$0xf]
        %v522 = vld [vmem:[#allocation3 + $0x28] sm:$0xf]
        %v523 = vld [vmem:[#allocation3 + $0x2c] sm:$0xf]
        %v524 = vld [vmem:[#allocation3 + $0x30] sm:$0xf]
        %v525 = vld [vmem:[#allocation3 + $0x34] sm:$0xf]
        %v526 = vld [vmem:[#allocation3 + $0x38] sm:$0xf]
        %v527 = vld [vmem:[#allocation3 + $0x3c] sm:$0xf]
        %v544 = vunpack.c.l.b16 %v512
        %v545 = vunpack.c.l.b16 %v513
        %v546 = vunpack.c.l.b16 %v514
        %v547 = vunpack.c.l.b16 %v515
        %v548 = vunpack.c.l.b16 %v516
        %v549 = vunpack.c.l.b16 %v517
        %v550 = vunpack.c.l.b16 %v518
        %v551 = vunpack.c.l.b16 %v519
        %v552 = vunpack.c.l.b16 %v520
        %v553 = vunpack.c.l.b16 %v521
        %v554 = vunpack.c.l.b16 %v522
        %v555 = vunpack.c.l.b16 %v523
        %v556 = vunpack.c.l.b16 %v524
        %v557 = vunpack.c.l.b16 %v525
        %v558 = vunpack.c.l.b16 %v526
        %v559 = vunpack.c.l.b16 %v527
        %v560 = vpack.c.b16 %v545, %v544
        %v561 = vpack.c.b16 %v547, %v546
        %v562 = vpack.c.b16 %v549, %v548
        %v563 = vpack.c.b16 %v551, %v550
        %v564 = vpack.c.b16 %v553, %v552
        %v565 = vpack.c.b16 %v555, %v554
        %v566 = vpack.c.b16 %v557, %v556
        %v567 = vpack.c.b16 %v559, %v558
        %576 = vmatprep.subr.bf16.mxu0 0
        %577 = vmatpush1.bf16.msra.mxu0 %v560
        %578 = vmatprep.subr.bf16.mxu0 0
        %579 = vmatpush1.bf16.msra.mxu0 %v561
        %580 = vmatprep.subr.bf16.mxu0 0
        %581 = vmatpush1.bf16.msra.mxu0 %v562
        %582 = vmatprep.subr.bf16.mxu0 0
        %583 = vmatpush1.bf16.msra.mxu0 %v563
        %584 = vmatprep.subr.bf16.mxu0 0
        %585 = vmatpush1.bf16.msra.mxu0 %v564
        %586 = vmatprep.subr.bf16.mxu0 0
        %587 = vmatpush1.bf16.msra.mxu0 %v565
        %588 = vmatprep.subr.bf16.mxu0 0
        %589 = vmatpush1.bf16.msra.mxu0 %v566
        %590 = vmatprep.subr.bf16.mxu0 0
        %591 = vmatpush1.bf16.msra.mxu0 %v567
        %592 = vmatprep.subr.bf16.mxu0 0
        %593 = vmatpush1.bf16.msra.mxu0 0
        %594 = vmatprep.subr.bf16.mxu0 0
        %595 = vmatpush1.bf16.msra.mxu0 0
        %596 = vmatprep.subr.bf16.mxu0 0
        %597 = vmatpush1.bf16.msra.mxu0 0
        %598 = vmatprep.subr.bf16.mxu0 0
        %599 = vmatpush1.bf16.msra.mxu0 0
        %600 = vmatprep.subr.bf16.mxu0 0
        %601 = vmatpush1.bf16.msra.mxu0 0
        %602 = vmatprep.subr.bf16.mxu0 0
        %603 = vmatpush1.bf16.msra.mxu0 0
        %604 = vmatprep.subr.bf16.mxu0 0
        %605 = vmatpush1.bf16.msra.mxu0 0
        %606 = vmatprep.subr.bf16.mxu0 0
        %607 = vmatpush1.bf16.msra.mxu0 0
        %608 = vmatprep.mubr.bf16.mxu0 0
        %609 = vmatmul.mubr.bf16.gmra.mrb[0].mxu0 %v511
        %v610 = vpop.f32.mrb[0].mxu0
        %v611 = vadd.f32 0.0, %v610
        %v612 = vpop.f32.mrb[0].mxu0
        %v613 = vpop.f32.mrb[0].mxu0
        %v614 = vpop.f32.mrb[0].mxu0
        %615 = vdwg.mxu0
        %v616 = vld [vmem:[%s4] sm:$0x1]
        %v618 = vlaneseq
        %v619 = vshrl.u32 %v618, 7
        %v620 = vsub.s32 0, %v619
        %v621 = vrot.slane %v616, %v620
        %vm623 = vcmp.ge.f32.partialorder %v611, %v621
        %v624 = vsel %vm623, 1, 0
        %v625 = vcvt.s32.f32 %v624
        %v626 = vpack.c.bf16 %v625, %v625
        %v627 = vld [vmem:[%s5] sm:$0xff]
        %v628 = vld [vmem:[%s5 + $0x8] sm:$0xff]
        %v629 = vld [vmem:[%s5 + $0x10] sm:$0xff]
        %v630 = vld [vmem:[%s5 + $0x18] sm:$0xff]
        %v631 = vld [vmem:[%s5 + $0x20] sm:$0xff]
        %v632 = vld [vmem:[%s5 + $0x28] sm:$0xff]
        %v633 = vld [vmem:[%s5 + $0x30] sm:$0xff]
        %v634 = vld [vmem:[%s5 + $0x38] sm:$0xff]
        %v635 = vld [vmem:[%s5 + $0x40] sm:$0xff]
        %v636 = vld [vmem:[%s5 + $0x48] sm:$0xff]
        %v637 = vld [vmem:[%s5 + $0x50] sm:$0xff]
        %v638 = vld [vmem:[%s5 + $0x58] sm:$0xff]
        %v639 = vld [vmem:[%s5 + $0x60] sm:$0xff]
        %v640 = vld [vmem:[%s5 + $0x68] sm:$0xff]
        %v641 = vld [vmem:[%s5 + $0x70] sm:$0xff]
        %v642 = vld [vmem:[%s5 + $0x78] sm:$0xff]
        %v659 = vunpack.c.l.b16 %v627
        %v660 = vunpack.c.h.b16 %v627
        %v661 = vunpack.c.l.b16 %v628
        %v662 = vunpack.c.h.b16 %v628
        %v663 = vunpack.c.l.b16 %v629
        %v664 = vunpack.c.h.b16 %v629
        %v665 = vunpack.c.l.b16 %v630
        %v666 = vunpack.c.h.b16 %v630
        %v667 = vunpack.c.l.b16 %v631
        %v668 = vunpack.c.h.b16 %v631
        %v669 = vunpack.c.l.b16 %v632
        %v670 = vunpack.c.h.b16 %v632
        %v671 = vunpack.c.l.b16 %v633
        %v672 = vunpack.c.h.b16 %v633
        %v673 = vunpack.c.l.b16 %v634
        %v674 = vunpack.c.h.b16 %v634
        %v675 = vunpack.c.l.b16 %v635
        %v676 = vunpack.c.h.b16 %v635
        %v677 = vunpack.c.l.b16 %v636
        %v678 = vunpack.c.h.b16 %v636
        %v679 = vunpack.c.l.b16 %v637
        %v680 = vunpack.c.h.b16 %v637
        %v681 = vunpack.c.l.b16 %v638
        %v682 = vunpack.c.h.b16 %v638
        %v683 = vunpack.c.l.b16 %v639
        %v684 = vunpack.c.h.b16 %v639
        %v685 = vunpack.c.l.b16 %v640
        %v686 = vunpack.c.h.b16 %v640
        %v687 = vunpack.c.l.b16 %v641
        %v688 = vunpack.c.h.b16 %v641
        %v689 = vunpack.c.l.b16 %v642
        %v690 = vunpack.c.h.b16 %v642
        %v691 = vpack.c.b16 %v661, %v659
        %v692 = vpack.c.b16 %v662, %v660
        %v693 = vpack.c.b16 %v665, %v663
        %v694 = vpack.c.b16 %v666, %v664
        %v695 = vpack.c.b16 %v669, %v667
        %v696 = vpack.c.b16 %v670, %v668
        %v697 = vpack.c.b16 %v673, %v671
        %v698 = vpack.c.b16 %v674, %v672
        %v699 = vpack.c.b16 %v677, %v675
        %v700 = vpack.c.b16 %v678, %v676
        %v701 = vpack.c.b16 %v681, %v679
        %v702 = vpack.c.b16 %v682, %v680
        %v703 = vpack.c.b16 %v685, %v683
        %v704 = vpack.c.b16 %v686, %v684
        %v705 = vpack.c.b16 %v689, %v687
        %v706 = vpack.c.b16 %v690, %v688
        %723 = vmatprep.subr.bf16.mxu0 %v692
        %724 = vmatpush1.bf16.msra.mxu0 %v691
        %725 = vmatprep.subr.bf16.mxu0 %v694
        %726 = vmatpush1.bf16.msra.mxu0 %v693
        %727 = vmatprep.subr.bf16.mxu0 %v696
        %728 = vmatpush1.bf16.msra.mxu0 %v695
        %729 = vmatprep.subr.bf16.mxu0 %v698
        %730 = vmatpush1.bf16.msra.mxu0 %v697
        %731 = vmatprep.subr.bf16.mxu0 %v700
        %732 = vmatpush1.bf16.msra.mxu0 %v699
        %733 = vmatprep.subr.bf16.mxu0 %v702
        %734 = vmatpush1.bf16.msra.mxu0 %v701
        %735 = vmatprep.subr.bf16.mxu0 %v704
        %736 = vmatpush1.bf16.msra.mxu0 %v703
        %737 = vmatprep.subr.bf16.mxu0 %v706
        %738 = vmatpush1.bf16.msra.mxu0 %v705
        %739 = vmatprep.subr.bf16.mxu0 0
        %740 = vmatpush1.bf16.msra.mxu0 0
        %741 = vmatprep.subr.bf16.mxu0 0
        %742 = vmatpush1.bf16.msra.mxu0 0
        %743 = vmatprep.subr.bf16.mxu0 0
        %744 = vmatpush1.bf16.msra.mxu0 0
        %745 = vmatprep.subr.bf16.mxu0 0
        %746 = vmatpush1.bf16.msra.mxu0 0
        %747 = vmatprep.subr.bf16.mxu0 0
        %748 = vmatpush1.bf16.msra.mxu0 0
        %749 = vmatprep.subr.bf16.mxu0 0
        %750 = vmatpush1.bf16.msra.mxu0 0
        %751 = vmatprep.subr.bf16.mxu0 0
        %752 = vmatpush1.bf16.msra.mxu0 0
        %753 = vmatprep.subr.bf16.mxu0 0
        %754 = vmatpush1.bf16.msra.mxu0 0
        %755 = vmatprep.mubr.bf16.mxu0 0
        %756 = vmatmul.mubr.bf16.gmra.mrb[0].mxu0 %v626
        %v757 = vpop.f32.mrb[0].mxu0
        %v758 = vadd.f32 0.0, %v757
        %v759 = vpop.f32.mrb[0].mxu0
        %v760 = vadd.f32 0.0, %v759
        %v761 = vpop.f32.mrb[0].mxu0
        %v762 = vpop.f32.mrb[0].mxu0
        %763 = vdwg.mxu0
        %v764 = vld [vmem:[%s6] sm:$0x3]
        %v766 = vlaneseq
        %v767 = vshrl.u32 %v766, 7
        %v768 = vsub.s32 0, %v767
        %v769 = vrot.slane %v764, %v768
        %v770 = vlaneseq
        %v771 = vshrl.u32 %v770, 7
        %v772 = vsub.s32 1, %v771
        %v773 = vrot.slane %v764, %v772
        %vm776 = vcmp.ge.f32.partialorder %v758, %v769
        %vm777 = vcmp.ge.f32.partialorder %v760, %v773
        %v778 = vsel %vm776, 1, 0
        %v779 = vsel %vm777, 1, 0
        %v780 = vcvt.s32.f32 %v778
        %v781 = vcvt.s32.f32 %v779
        %v782 = vpack.c.bf16 %v780, %v780
        %v783 = vpack.c.bf16 %v781, %v781
        %v784 = vld [vmem:[#allocation6] sm:$0xff]
        %v785 = vld [vmem:[#allocation6 + $0x8] sm:$0xff]
        %v786 = vld [vmem:[#allocation6 + $0x10] sm:$0xff]
        %v787 = vld [vmem:[#allocation6 + $0x18] sm:$0xff]
        %v788 = vld [vmem:[#allocation6 + $0x20] sm:$0xff]
        %v789 = vld [vmem:[#allocation6 + $0x28] sm:$0xff]
        %v790 = vld [vmem:[#allocation6 + $0x30] sm:$0xff]
        %v791 = vld [vmem:[#allocation6 + $0x38] sm:$0xff]
        %v792 = vld [vmem:[#allocation6 + $0x40] sm:$0xff]
        %v793 = vld [vmem:[#allocation6 + $0x48] sm:$0xff]
        %v794 = vld [vmem:[#allocation6 + $0x50] sm:$0xff]
        %v795 = vld [vmem:[#allocation6 + $0x58] sm:$0xff]
        %v796 = vld [vmem:[#allocation6 + $0x60] sm:$0xff]
        %v797 = vld [vmem:[#allocation6 + $0x68] sm:$0xff]
        %v798 = vld [vmem:[#allocation6 + $0x70] sm:$0xff]
        %v799 = vld [vmem:[#allocation6 + $0x78] sm:$0xff]
        %v800 = vld [vmem:[#allocation6 + $0x80] sm:$0xff]
        %v801 = vld [vmem:[#allocation6 + $0x88] sm:$0xff]
        %v802 = vld [vmem:[#allocation6 + $0x90] sm:$0xff]
        %v803 = vld [vmem:[#allocation6 + $0x98] sm:$0xff]
        %v804 = vld [vmem:[#allocation6 + $0xa0] sm:$0xff]
        %v805 = vld [vmem:[#allocation6 + $0xa8] sm:$0xff]
        %v806 = vld [vmem:[#allocation6 + $0xb0] sm:$0xff]
        %v807 = vld [vmem:[#allocation6 + $0xb8] sm:$0xff]
        %v808 = vld [vmem:[#allocation6 + $0xc0] sm:$0xff]
        %v809 = vld [vmem:[#allocation6 + $0xc8] sm:$0xff]
        %v810 = vld [vmem:[#allocation6 + $0xd0] sm:$0xff]
        %v811 = vld [vmem:[#allocation6 + $0xd8] sm:$0xff]
        %v812 = vld [vmem:[#allocation6 + $0xe0] sm:$0xff]
        %v813 = vld [vmem:[#allocation6 + $0xe8] sm:$0xff]
        %v814 = vld [vmem:[#allocation6 + $0xf0] sm:$0xff]
        %v815 = vld [vmem:[#allocation6 + $0xf8] sm:$0xff]
        %v848 = vunpack.c.l.b16 %v784
        %v849 = vunpack.c.h.b16 %v784
        %v850 = vunpack.c.l.b16 %v785
        %v851 = vunpack.c.h.b16 %v785
        %v852 = vunpack.c.l.b16 %v786
        %v853 = vunpack.c.h.b16 %v786
        %v854 = vunpack.c.l.b16 %v787
        %v855 = vunpack.c.h.b16 %v787
        %v856 = vunpack.c.l.b16 %v788
        %v857 = vunpack.c.h.b16 %v788
        %v858 = vunpack.c.l.b16 %v789
        %v859 = vunpack.c.h.b16 %v789
        %v860 = vunpack.c.l.b16 %v790
        %v861 = vunpack.c.h.b16 %v790
        %v862 = vunpack.c.l.b16 %v791
        %v863 = vunpack.c.h.b16 %v791
        %v864 = vunpack.c.l.b16 %v792
        %v865 = vunpack.c.h.b16 %v792
        %v866 = vunpack.c.l.b16 %v793
        %v867 = vunpack.c.h.b16 %v793
        %v868 = vunpack.c.l.b16 %v794
        %v869 = vunpack.c.h.b16 %v794
        %v870 = vunpack.c.l.b16 %v795
        %v871 = vunpack.c.h.b16 %v795
        %v872 = vunpack.c.l.b16 %v796
        %v873 = vunpack.c.h.b16 %v796
        %v874 = vunpack.c.l.b16 %v797
        %v875 = vunpack.c.h.b16 %v797
        %v876 = vunpack.c.l.b16 %v798
        %v877 = vunpack.c.h.b16 %v798
        %v878 = vunpack.c.l.b16 %v799
        %v879 = vunpack.c.h.b16 %v799
        %v880 = vunpack.c.l.b16 %v800
        %v881 = vunpack.c.h.b16 %v800
        %v882 = vunpack.c.l.b16 %v801
        %v883 = vunpack.c.h.b16 %v801
        %v884 = vunpack.c.l.b16 %v802
        %v885 = vunpack.c.h.b16 %v802
        %v886 = vunpack.c.l.b16 %v803
        %v887 = vunpack.c.h.b16 %v803
        %v888 = vunpack.c.l.b16 %v804
        %v889 = vunpack.c.h.b16 %v804
        %v890 = vunpack.c.l.b16 %v805
        %v891 = vunpack.c.h.b16 %v805
        %v892 = vunpack.c.l.b16 %v806
        %v893 = vunpack.c.h.b16 %v806
        %v894 = vunpack.c.l.b16 %v807
        %v895 = vunpack.c.h.b16 %v807
        %v896 = vunpack.c.l.b16 %v808
        %v897 = vunpack.c.h.b16 %v808
        %v898 = vunpack.c.l.b16 %v809
        %v899 = vunpack.c.h.b16 %v809
        %v900 = vunpack.c.l.b16 %v810
        %v901 = vunpack.c.h.b16 %v810
        %v902 = vunpack.c.l.b16 %v811
        %v903 = vunpack.c.h.b16 %v811
        %v904 = vunpack.c.l.b16 %v812
        %v905 = vunpack.c.h.b16 %v812
        %v906 = vunpack.c.l.b16 %v813
        %v907 = vunpack.c.h.b16 %v813
        %v908 = vunpack.c.l.b16 %v814
        %v909 = vunpack.c.h.b16 %v814
        %v910 = vunpack.c.l.b16 %v815
        %v911 = vunpack.c.h.b16 %v815
        %v912 = vpack.c.b16 %v850, %v848
        %v913 = vpack.c.b16 %v851, %v849
        %v914 = vpack.c.b16 %v854, %v852
        %v915 = vpack.c.b16 %v855, %v853
        %v916 = vpack.c.b16 %v858, %v856
        %v917 = vpack.c.b16 %v859, %v857
        %v918 = vpack.c.b16 %v862, %v860
        %v919 = vpack.c.b16 %v863, %v861
        %v920 = vpack.c.b16 %v866, %v864
        %v921 = vpack.c.b16 %v867, %v865
        %v922 = vpack.c.b16 %v870, %v868
        %v923 = vpack.c.b16 %v871, %v869
        %v924 = vpack.c.b16 %v874, %v872
        %v925 = vpack.c.b16 %v875, %v873
        %v926 = vpack.c.b16 %v878, %v876
        %v927 = vpack.c.b16 %v879, %v877
        %v928 = vpack.c.b16 %v882, %v880
        %v929 = vpack.c.b16 %v883, %v881
        %v930 = vpack.c.b16 %v886, %v884
        %v931 = vpack.c.b16 %v887, %v885
        %v932 = vpack.c.b16 %v890, %v888
        %v933 = vpack.c.b16 %v891, %v889
        %v934 = vpack.c.b16 %v894, %v892
        %v935 = vpack.c.b16 %v895, %v893
        %v936 = vpack.c.b16 %v898, %v896
        %v937 = vpack.c.b16 %v899, %v897
        %v938 = vpack.c.b16 %v902, %v900
        %v939 = vpack.c.b16 %v903, %v901
        %v940 = vpack.c.b16 %v906, %v904
        %v941 = vpack.c.b16 %v907, %v905
        %v942 = vpack.c.b16 %v910, %v908
        %v943 = vpack.c.b16 %v911, %v909
        %976 = vmatprep.subr.bf16.mxu0 %v913
        %977 = vmatpush1.bf16.msra.mxu0 %v912
        %978 = vmatprep.subr.bf16.mxu0 %v915
        %979 = vmatpush1.bf16.msra.mxu0 %v914
        %980 = vmatprep.subr.bf16.mxu0 %v917
        %981 = vmatpush1.bf16.msra.mxu0 %v916
        %982 = vmatprep.subr.bf16.mxu0 %v919
        %983 = vmatpush1.bf16.msra.mxu0 %v918
        %984 = vmatprep.subr.bf16.mxu0 %v921
        %985 = vmatpush1.bf16.msra.mxu0 %v920
        %986 = vmatprep.subr.bf16.mxu0 %v923
        %987 = vmatpush1.bf16.msra.mxu0 %v922
        %988 = vmatprep.subr.bf16.mxu0 %v925
        %989 = vmatpush1.bf16.msra.mxu0 %v924
        %990 = vmatprep.subr.bf16.mxu0 %v927
        %991 = vmatpush1.bf16.msra.mxu0 %v926
        %992 = vmatprep.subr.bf16.mxu0 %v929
        %993 = vmatpush1.bf16.msra.mxu0 %v928
        %994 = vmatprep.subr.bf16.mxu0 %v931
        %995 = vmatpush1.bf16.msra.mxu0 %v930
        %996 = vmatprep.subr.bf16.mxu0 %v933
        %997 = vmatpush1.bf16.msra.mxu0 %v932
        %998 = vmatprep.subr.bf16.mxu0 %v935
        %999 = vmatpush1.bf16.msra.mxu0 %v934
        %1000 = vmatprep.subr.bf16.mxu0 %v937
        %1001 = vmatpush1.bf16.msra.mxu0 %v936
        %1002 = vmatprep.subr.bf16.mxu0 %v939
        %1003 = vmatpush1.bf16.msra.mxu0 %v938
        %1004 = vmatprep.subr.bf16.mxu0 %v941
        %1005 = vmatpush1.bf16.msra.mxu0 %v940
        %1006 = vmatprep.subr.bf16.mxu0 %v943
        %1007 = vmatpush1.bf16.msra.mxu0 %v942
        %1008 = vmatprep.mubr.bf16.mxu0 %v783
        %1009 = vmatmul.mubr.bf16.gmra.mrb[0].mxu0 %v782
        %v1010 = vpop.f32.mrb[0].mxu0
        %v1011 = vadd.f32 0.0, %v1010
        %v1012 = vpop.f32.mrb[0].mxu0
        %v1013 = vadd.f32 0.0, %v1012
        %v1014 = vpop.f32.mrb[0].mxu0
        %v1015 = vpop.f32.mrb[0].mxu0
        %1016 = vdwg.mxu0
        %v1017 = vld [vmem:[%s8] sm:$0x3]
        %v1019 = vlaneseq
        %v1020 = vshrl.u32 %v1019, 7
        %v1021 = vsub.s32 0, %v1020
        %v1022 = vrot.slane %v1017, %v1021
        %v1023 = vlaneseq
        %v1024 = vshrl.u32 %v1023, 7
        %v1025 = vsub.s32 1, %v1024
        %v1026 = vrot.slane %v1017, %v1025
        %vm1029 = vcmp.ge.f32.partialorder %v1011, %v1022
        %vm1030 = vcmp.ge.f32.partialorder %v1013, %v1026
        %v1031 = vsel %vm1029, 1, 0
        %v1032 = vsel %vm1030, 1, 0
        %v1033 = vcvt.s32.f32 %v1031
        %v1034 = vcvt.s32.f32 %v1032
        %v1035 = vpack.c.bf16 %v1033, %v1033
        %v1036 = vpack.c.bf16 %v1034, %v1034
        %v1037 = vld [vmem:[#allocation2] sm:$0xff]
        %v1038 = vld [vmem:[#allocation8] sm:$0xf]
        %v1039 = vld [vmem:[#allocation8 + $0x4] sm:$0xf]
        %v1040 = vld [vmem:[#allocation8 + $0x8] sm:$0xf]
        %v1041 = vld [vmem:[#allocation8 + $0xc] sm:$0xf]
        %v1042 = vld [vmem:[#allocation8 + $0x10] sm:$0xf]
        %v1043 = vld [vmem:[#allocation8 + $0x14] sm:$0xf]
        %v1044 = vld [vmem:[#allocation8 + $0x18] sm:$0xf]
        %v1045 = vld [vmem:[#allocation8 + $0x1c] sm:$0xf]
        %v1046 = vld [vmem:[#allocation8 + $0x20] sm:$0xf]
        %v1047 = vld [vmem:[#allocation8 + $0x24] sm:$0xf]
        %v1048 = vld [vmem:[#allocation8 + $0x28] sm:$0xf]
        %v1049 = vld [vmem:[#allocation8 + $0x2c] sm:$0xf]
        %v1050 = vld [vmem:[#allocation8 + $0x30] sm:$0xf]
        %v1051 = vld [vmem:[#allocation8 + $0x34] sm:$0xf]
        %v1052 = vld [vmem:[#allocation8 + $0x38] sm:$0xf]
        %v1053 = vld [vmem:[#allocation8 + $0x3c] sm:$0xf]
        %v1054 = vld [vmem:[#allocation8 + $0x40] sm:$0xf]
        %v1055 = vld [vmem:[#allocation8 + $0x44] sm:$0xf]
        %v1056 = vld [vmem:[#allocation8 + $0x48] sm:$0xf]
        %v1057 = vld [vmem:[#allocation8 + $0x4c] sm:$0xf]
        %v1058 = vld [vmem:[#allocation8 + $0x50] sm:$0xf]
        %v1059 = vld [vmem:[#allocation8 + $0x54] sm:$0xf]
        %v1060 = vld [vmem:[#allocation8 + $0x58] sm:$0xf]
        %v1061 = vld [vmem:[#allocation8 + $0x5c] sm:$0xf]
        %v1062 = vld [vmem:[#allocation8 + $0x60] sm:$0xf]
        %v1063 = vld [vmem:[#allocation8 + $0x64] sm:$0xf]
        %v1064 = vld [vmem:[#allocation8 + $0x68] sm:$0xf]
        %v1065 = vld [vmem:[#allocation8 + $0x6c] sm:$0xf]
        %v1066 = vld [vmem:[#allocation8 + $0x70] sm:$0xf]
        %v1067 = vld [vmem:[#allocation8 + $0x74] sm:$0xf]
        %v1068 = vld [vmem:[#allocation8 + $0x78] sm:$0xf]
        %v1069 = vld [vmem:[#allocation8 + $0x7c] sm:$0xf]
        %v1070 = vld [vmem:[%s10] sm:$0x1]
        %v1072 = vlaneseq
        %v1073 = vshrl.u32 %v1072, 7
        %v1074 = vsub.s32 0, %v1073
        %v1075 = vrot.slane %v1070, %v1074
        %v1109 = vunpack.c.l.b16 %v1038
        %v1110 = vunpack.c.l.b16 %v1039
        %v1111 = vunpack.c.l.b16 %v1040
        %v1112 = vunpack.c.l.b16 %v1041
        %v1113 = vunpack.c.l.b16 %v1042
        %v1114 = vunpack.c.l.b16 %v1043
        %v1115 = vunpack.c.l.b16 %v1044
        %v1116 = vunpack.c.l.b16 %v1045
        %v1117 = vunpack.c.l.b16 %v1046
        %v1118 = vunpack.c.l.b16 %v1047
        %v1119 = vunpack.c.l.b16 %v1048
        %v1120 = vunpack.c.l.b16 %v1049
        %v1121 = vunpack.c.l.b16 %v1050
        %v1122 = vunpack.c.l.b16 %v1051
        %v1123 = vunpack.c.l.b16 %v1052
        %v1124 = vunpack.c.l.b16 %v1053
        %v1125 = vunpack.c.l.b16 %v1054
        %v1126 = vunpack.c.l.b16 %v1055
        %v1127 = vunpack.c.l.b16 %v1056
        %v1128 = vunpack.c.l.b16 %v1057
        %v1129 = vunpack.c.l.b16 %v1058
        %v1130 = vunpack.c.l.b16 %v1059
        %v1131 = vunpack.c.l.b16 %v1060
        %v1132 = vunpack.c.l.b16 %v1061
        %v1133 = vunpack.c.l.b16 %v1062
        %v1134 = vunpack.c.l.b16 %v1063
        %v1135 = vunpack.c.l.b16 %v1064
        %v1136 = vunpack.c.l.b16 %v1065
        %v1137 = vunpack.c.l.b16 %v1066
        %v1138 = vunpack.c.l.b16 %v1067
        %v1139 = vunpack.c.l.b16 %v1068
        %v1140 = vunpack.c.l.b16 %v1069
        %v1141 = vpack.c.b16 %v1110, %v1109
        %v1142 = vpack.c.b16 %v1112, %v1111
        %v1143 = vpack.c.b16 %v1114, %v1113
        %v1144 = vpack.c.b16 %v1116, %v1115
        %v1145 = vpack.c.b16 %v1118, %v1117
        %v1146 = vpack.c.b16 %v1120, %v1119
        %v1147 = vpack.c.b16 %v1122, %v1121
        %v1148 = vpack.c.b16 %v1124, %v1123
        %v1149 = vpack.c.b16 %v1126, %v1125
        %v1150 = vpack.c.b16 %v1128, %v1127
        %v1151 = vpack.c.b16 %v1130, %v1129
        %v1152 = vpack.c.b16 %v1132, %v1131
        %v1153 = vpack.c.b16 %v1134, %v1133
        %v1154 = vpack.c.b16 %v1136, %v1135
        %v1155 = vpack.c.b16 %v1138, %v1137
        %v1156 = vpack.c.b16 %v1140, %v1139
        %1173 = vmatprep.subr.bf16.mxu0 0
        %1174 = vmatpush1.bf16.msra.mxu0 %v1141
        %1175 = vmatprep.subr.bf16.mxu0 0
        %1176 = vmatpush1.bf16.msra.mxu0 %v1142
        %1177 = vmatprep.subr.bf16.mxu0 0
        %1178 = vmatpush1.bf16.msra.mxu0 %v1143
        %1179 = vmatprep.subr.bf16.mxu0 0
        %1180 = vmatpush1.bf16.msra.mxu0 %v1144
        %1181 = vmatprep.subr.bf16.mxu0 0
        %1182 = vmatpush1.bf16.msra.mxu0 %v1145
        %1183 = vmatprep.subr.bf16.mxu0 0
        %1184 = vmatpush1.bf16.msra.mxu0 %v1146
        %1185 = vmatprep.subr.bf16.mxu0 0
        %1186 = vmatpush1.bf16.msra.mxu0 %v1147
        %1187 = vmatprep.subr.bf16.mxu0 0
        %1188 = vmatpush1.bf16.msra.mxu0 %v1148
        %1189 = vmatprep.subr.bf16.mxu0 0
        %1190 = vmatpush1.bf16.msra.mxu0 %v1149
        %1191 = vmatprep.subr.bf16.mxu0 0
        %1192 = vmatpush1.bf16.msra.mxu0 %v1150
        %1193 = vmatprep.subr.bf16.mxu0 0
        %1194 = vmatpush1.bf16.msra.mxu0 %v1151
        %1195 = vmatprep.subr.bf16.mxu0 0
        %1196 = vmatpush1.bf16.msra.mxu0 %v1152
        %1197 = vmatprep.subr.bf16.mxu0 0
        %1198 = vmatpush1.bf16.msra.mxu0 %v1153
        %1199 = vmatprep.subr.bf16.mxu0 0
        %1200 = vmatpush1.bf16.msra.mxu0 %v1154
        %1201 = vmatprep.subr.bf16.mxu0 0
        %1202 = vmatpush1.bf16.msra.mxu0 %v1155
        %1203 = vmatprep.subr.bf16.mxu0 0
        %1204 = vmatpush1.bf16.msra.mxu0 %v1156
        %1205 = vmatprep.mubr.bf16.mxu0 %v1036
        %1206 = vmatmul.mubr.bf16.gmra.mrb[0].mxu0 %v1035
        %v1207 = vpop.f32.mrb[0].mxu0
        %v1208 = vadd.f32 %v1075, %v1207
        %v1209 = vpop.f32.mrb[0].mxu0
        %v1210 = vpop.f32.mrb[0].mxu0
        %v1211 = vpop.f32.mrb[0].mxu0
        %1212 = vdwg.mxu0
        %v1213 = vadd.f32 %v1037, %v1208
        %1214 = vst [vmem:[#allocation2] sm:$0xff] %v1213
        %p1215 = scmp.eq.s32.totalorder %s30, 23
        // Predicated region
        $region81: #{tpu_custom_call.1} parent=63 // pred_check
          %p1216 = pneg %p1215
        $region82: #{tpu_custom_call.1} parent=63 // pred_check_branch
          %1218 = sbr.rel (%p1216) target = $region84
        $region83: #{tpu_custom_call.1} parent=63 // pred_region
          %v1219 = vld [vmem:[#allocation2] sm:$0xff]
          %1220 = vst [vmem:[#allocation9] sm:$0xff] %v1219
        $region84: #{tpu_custom_call.1} parent=63 // pred_fallthru
          _
        // Predicated region
        $region85: #{tpu_custom_call.1} parent=63 // pred_check
          %p1221 = pneg %p293
        $region86: #{tpu_custom_call.1} parent=63 // pred_check_branch
          %1223 = sbr.rel (%p1221) target = $region88
        $region87: #{tpu_custom_call.1} parent=63 // pred_region
          %s1225 = ssub.s32 128, 128
          %1226 = vsyncadd [#allocation5], %s1225
          %s1227 = smul.addr %s29, 128
          %s1228 = scalar_lea.hbm %s11, %s1227
          %s1230 = sshll.u32 [#allocation9], 4
          %s1231 = int_to_ptr.vmem [resolvable:$true] %s1230
          %1233 = dma.vmem_to_hbm [thread:$0]  %s1231, 128, %s1228, [#allocation5]
        $region88: #{tpu_custom_call.1} parent=63 // pred_fallthru
          _
        // Predicated region
        $region89: #{tpu_custom_call.1} parent=63 // pred_check
          %p1234 = pneg %p293
        $region90: #{tpu_custom_call.1} parent=63 // pred_check_branch
          %1236 = sbr.rel (%p1234) target = $region92
        $region91: #{tpu_custom_call.1} parent=63 // pred_region
          %1237 = dma.done [#allocation5], 128
        $region92: #{tpu_custom_call.1} parent=63 // pred_fallthru
          _
      $region64: #{tpu_custom_call.1} parent=5 // pred_fallthru
        _
      %p1238 = scmp.le.s32.totalorder 2, %s20
      // Predicated region
      $region93: #{tpu_custom_call.1} parent=5 // pred_check
        %p1239 = pneg %p1238
      $region94: #{tpu_custom_call.1} parent=5 // pred_check_branch
        %1241 = sbr.rel (%p1239) target = $region96
      $region95: #{tpu_custom_call.1} parent=5 // pred_region
        %s1242 = ssub.s32 %s20, 2
      $region96: #{tpu_custom_call.1} parent=5 // pred_fallthru
        _
    $region6: #{tpu_custom_call.1} parent=1 // loop_footer
      %s24 = sadd.s32 1, %s20
    $region7: #{tpu_custom_call.1} parent=1 // loop_footer_branch
      %19 = sbr.rel target = $region3
    $region8: #{tpu_custom_call.1} parent=1 // loop_exit
      _
    %1243 = vsyncpa [#allocation4], 1
    %s1244 = scalar_lea.sflag [#allocation4], 1
    %1245 = vsyncpa %s1244, 1
    %1246 = vsyncpa [#allocation7], 1
    %1247 = vsyncpa [#allocation5], 1
    %s1248 = scalar_lea.sflag [#allocation5], 1
    %1249 = vsyncpa %s1248, 1

</llo_original>
